<compile_context>
chip_gen: v6e
topology: v6e:2x2x1
jax: 0.10.0
libtpu: 0.0.40
codegen_flags: <defaults>
</compile_context>

<pallas_src>
import functools

import numpy as np

import jax
import jax.numpy as jnp
from jax.experimental import pallas as pl
from jax.experimental.pallas import tpu as pltpu

GAMMA = 0.25
EPS = 1e-6
HALO_UNIT = 128                      # lane granularity of the halo block


def _cdiv(a, b):
    return -(-a // b)


def _round_up(n, m):
    return _cdiv(n, m) * m


def _pick_tile(B, L_out, C_in, C_out, Cop, K, halo, out_bytes, tl_max):
    """VMEM-budget-aware L tile + vmem_limit (feedback items 3/4/5/9/10)."""
    try:
        vmem_cap = int(pltpu.get_tpu_info().vmem_capacity_bytes)
    except Exception:                        # conservative (v7x-sized) fallback
        vmem_cap = 64 * 1024 * 1024
    budget = min(int(0.70 * vmem_cap), 96 * 1024 * 1024)

    kcin = K * C_in

    def need(tl):
        bf16, dbl = 2, 2                                   # bytes, double-buffer
        n = dbl * 2 * (3 * Cop) * kcin * bf16              # w_top + w_bot slabs
        n += dbl * (3 * Cop) * 4                           # fused bias (f32)
        n += dbl * C_in * (tl + halo) * bf16               # x window + halo
        n += dbl * 2 * C_out * tl * out_bytes              # z / zp output blocks
        n += 3 * C_in * (tl + halo) * bf16                 # x / x+ / x- temporaries
        n += 2 * (3 * Cop) * tl * 4                        # f32 acc + select tail
        return n

    tl = max(halo, min(_round_up(tl_max, halo), _round_up(L_out, halo)))
    while tl > halo and need(tl) > budget:
        tl = max(halo, _round_up(tl // 2, halo))
    # v7x megacore: make sure there are >= 2 grid steps whenever possible.
    if B * _cdiv(L_out, tl) < 2 and L_out > halo:
        tl = max(halo, _round_up(_cdiv(L_out, 2), halo))

    vmem_limit = int(min(max(2 * need(tl), 32 * 1024 * 1024), budget))
    vmem_limit = max(vmem_limit, need(tl) + (2 << 20))
    return tl, vmem_limit


@functools.partial(jax.jit, static_argnames=("pad", "out_dtype", "tl_max"))
def modified_conv_gamma(x, weight, bias, *, pad=1, out_dtype=jnp.bfloat16,
                        tl_max=1024):
    """ModifiedConv(conv1d, transform='gamma') forward.

    Returns (out, zp):
      out : (B, C_out, L_out)  forward value (numerically == conv(x, w, b))
      zp  : (B, C_out, L_out)  gamma-modified pre-activations (LRP residual)
    """
    B, C_in, L = x.shape
    C_out, c_in_w, K = weight.shape
    assert c_in_w == C_in, (c_in_w, C_in)
    L_out = L + 2 * pad - K + 1

    halo = HALO_UNIT * _cdiv(max(K - 1, 1), HALO_UNIT)     # >= K-1, lane aligned
    Cop = _round_up(C_out, 8)                              # sublane-aligned groups
    out_bytes = np.dtype(out_dtype).itemsize

    tl, vmem_limit = _pick_tile(B, L_out, C_in, C_out, Cop, K, halo,
                                out_bytes, tl_max)
    nblk = _cdiv(L_out, tl)
    L_pad = nblk * tl + halo          # conv zero-pad + tile/halo slack, zeros

    # The ONLY XLA pass over x: bf16 cast + zero pad along L, native NCL layout
    # kept (no im2col, no transpose).
    x_pad = jnp.pad(x.astype(jnp.bfloat16),
                    ((0, 0), (0, 0), (pad, L_pad - pad - L)))

    # ---- tiny once-per-call gamma weight/bias prep (XLA side) ----
    w = jnp.transpose(weight.astype(jnp.float32), (2, 0, 1))    # (K, C_out, C_in)
    wp = w + GAMMA * jnp.maximum(w, 0.0)                        # gamma(min=0)
    wm = w + GAMMA * jnp.minimum(w, 0.0)                        # gamma(max=0)
    pad_c = lambda a: jnp.pad(a, ((0, 0), (0, Cop - C_out), (0, 0)))
    # fused LHS row groups: [ z | zp_pos | zp_neg ]
    w_top = jnp.concatenate([pad_c(w), pad_c(wp), pad_c(wm)], axis=1
                            ).astype(jnp.bfloat16)              # (K, 3*Cop, C_in)
    w_bot = jnp.concatenate([pad_c(w), pad_c(wm), pad_c(wp)], axis=1
                            ).astype(jnp.bfloat16)

    bv = bias.astype(jnp.float32)
    bp = bv + GAMMA * jnp.maximum(bv, 0.0)
    bm = bv + GAMMA * jnp.minimum(bv, 0.0)
    pad_b = lambda a: jnp.pad(a, (0, Cop - C_out))
    b_fus = jnp.concatenate([pad_b(bv), pad_b(bp + bv), pad_b(bm + bv)]
                            ).reshape(3 * Cop, 1)               # (3*Cop, 1) f32

    def kernel(xa_ref, xh_ref, wt_ref, wb_ref, b_ref, z_ref, zp_ref):
        # xa: (C_in, tl) main window; xh: (C_in, halo) right halo   (bf16)
        xw = jnp.concatenate([xa_ref[...], xh_ref[...]], axis=-1)  # (C_in, tl+halo)
        xpos = jnp.maximum(xw, 0)          # x.clamp(min=0)
        xneg = jnp.minimum(xw, 0)          # x.clamp(max=0)

        # In-kernel "im2col": K statically shifted lane slices feed K per-tap
        # accumulated MXU matmuls with f32 accumulation.
        acc = jnp.zeros((3 * Cop, tl), dtype=jnp.float32)
        for k in range(K):
            acc = (acc
                   + jnp.dot(wt_ref[k], xpos[:, k:k + tl],
                             preferred_element_type=jnp.float32)
                   + jnp.dot(wb_ref[k], xneg[:, k:k + tl],
                             preferred_element_type=jnp.float32))
        acc = acc + b_ref[...]             # (3*Cop, 1) broadcast along lanes

        z = acc[:C_out]                    # conv(x, w, b)
        zp_pos = acc[Cop:Cop + C_out]
        zp_neg = acc[2 * Cop:2 * Cop + C_out]
        # branch decided on the f32 accumulator, matching the module's masks
        zp = jnp.where(z > EPS, zp_pos, jnp.where(z < EPS, zp_neg, 0.0))

        z_ref[...] = z.astype(z_ref.dtype)
        zp_ref[...] = zp.astype(zp_ref.dtype)

    x_main = pl.BlockSpec((None, C_in, tl), lambda bb, i: (bb, 0, i))
    x_halo = pl.BlockSpec((None, C_in, halo),
                          lambda bb, i: (bb, 0, (i + 1) * (tl // halo)))
    # Grid-invariant operands (constant index_map -> DMA'd once, kept resident).
    # TODO(synk): add pipeline_mode=pl.Buffered(1) here once single-buffering of
    # grid-invariant operands is confirmed on this jax build (halves their VMEM).
    w_spec = pl.BlockSpec((K, 3 * Cop, C_in), lambda bb, i: (0, 0, 0))
    b_spec = pl.BlockSpec((3 * Cop, 1), lambda bb, i: (0, 0))
    o_spec = pl.BlockSpec((None, C_out, tl), lambda bb, i: (bb, 0, i))

    z_full, zp_full = pl.pallas_call(
        kernel,
        out_shape=(jax.ShapeDtypeStruct((B, C_out, nblk * tl), out_dtype),
                   jax.ShapeDtypeStruct((B, C_out, nblk * tl), out_dtype)),
        grid=(B, nblk),
        in_specs=[x_main, x_halo, w_spec, w_spec, b_spec],
        out_specs=(o_spec, o_spec),
        compiler_params=pltpu.CompilerParams(
            dimension_semantics=("parallel", "parallel"),
            vmem_limit_bytes=vmem_limit),
    )(x_pad, x_pad, w_top, w_bot, b_fus)

    if nblk * tl != L_out:                 # tiny slice, no transpose pass
        z_full = z_full[:, :, :L_out]
        zp_full = zp_full[:, :, :L_out]
    return z_full, zp_full


# -------------------- pure-JAX reference (correctness check) --------------------
def _conv1d_ref(x, w, b, pad):
    y = jax.lax.conv_general_dilated(
        x, w, window_strides=(1,), padding=[(pad, pad)],
        dimension_numbers=("NCH", "OIH", "NCH"))
    return y + b[None, :, None]


def _modified_conv_ref(x, weight, bias, pad):
    wp = weight + GAMMA * jnp.maximum(weight, 0.0)
    wm = weight + GAMMA * jnp.minimum(weight, 0.0)
    bp = bias + GAMMA * jnp.maximum(bias, 0.0)
    bm = bias + GAMMA * jnp.minimum(bias, 0.0)
    xpos = jnp.maximum(x, 0.0)
    xneg = jnp.minimum(x, 0.0)

    z = _conv1d_ref(x, weight, bias, pad)
    zp_pos = _conv1d_ref(xpos, wp, bp, pad) + _conv1d_ref(xneg, wm, bias, pad)
    zp_neg = _conv1d_ref(xpos, wm, bm, pad) + _conv1d_ref(xneg, wp, bias, pad)
    zp = jnp.where(z > EPS, zp_pos, jnp.where(z < EPS, zp_neg, 0.0))
    return z, zp


if __name__ == "__main__":
    key = jax.random.PRNGKey(0)
    kx, kw, kb = jax.random.split(key, 3)

    B, C_in, L = 2, 4, 16
    C_out, K, pad = 8, 3, 1

    x = jax.random.normal(kx, (B, C_in, L), dtype=jnp.float32)
    weight = 0.3 * jax.random.normal(kw, (C_out, C_in, K), dtype=jnp.float32)
    bias = 0.1 * jax.random.normal(kb, (C_out,), dtype=jnp.float32)

    out, zp = modified_conv_gamma(x, weight, bias, pad=pad)
    out = jax.block_until_ready(out)
    zp = jax.block_until_ready(zp)

    z_ref, zp_ref = _modified_conv_ref(x, weight, bias, pad)

    assert out.shape == (B, C_out, L), out.shape
    assert zp.shape == (B, C_out, L), zp.shape

    out32 = out.astype(jnp.float32)
    zp32 = zp.astype(jnp.float32)

    # Forward value of the module is zp * (z / zp).data == z numerically
    # (the detached division is an autograd-routing trick only).
    assert jnp.allclose(out32, z_ref, rtol=3e-2, atol=5e-2), (
        "Pallas forward output does not match the reference conv")

    # Check the gamma-modified pre-activations where the z>eps / z<eps mask
    # decision is unambiguous under bf16 rounding of the matmul operands.
    safe = jnp.abs(z_ref - EPS) > 5e-2
    assert jnp.allclose(jnp.where(safe, zp32, 0.0), jnp.where(safe, zp_ref, 0.0),
                        rtol=3e-2, atol=5e-2), (
        "Pallas zp residual does not match the reference")

    print("KERNEL_OK")
</pallas_src>

<mosaic_0001>
module attributes {stable_mosaic.version = 11 : i64} {
  func.func @kernel(%arg0: i32, %arg1: i32, %arg2: memref<1x4x128xbf16, #tpu.memory_space<vmem>>, %arg3: memref<1x4x128xbf16, #tpu.memory_space<vmem>>, %arg4: memref<3x24x4xbf16, #tpu.memory_space<vmem>>, %arg5: memref<3x24x4xbf16, #tpu.memory_space<vmem>>, %arg6: memref<24x1xf32, #tpu.memory_space<vmem>>, %arg7: memref<1x8x128xbf16, #tpu.memory_space<vmem>>, %arg8: memref<1x8x128xbf16, #tpu.memory_space<vmem>>) attributes {dimension_semantics = [#tpu.dimension_semantics<parallel>, #tpu.dimension_semantics<parallel>], iteration_bounds = array<i64: 2, 1>, scalar_prefetch = 0 : i64, scratch_operands = 0 : i64, tpu.core_type = #tpu.core_type<tc>, window_params = [{transform_indices = @transform_0, window_bounds = array<i64: 1, 4, 128>}, {transform_indices = @transform_1, window_bounds = array<i64: 1, 4, 128>}, {pipeline_mode = #tpu.pipeline_mode<synchronous>, transform_indices = @transform_2, window_bounds = array<i64: 3, 24, 4>}, {pipeline_mode = #tpu.pipeline_mode<synchronous>, transform_indices = @transform_3, window_bounds = array<i64: 3, 24, 4>}, {pipeline_mode = #tpu.pipeline_mode<synchronous>, transform_indices = @transform_4, window_bounds = array<i64: 24, 1>}, {transform_indices = @transform_5, window_bounds = array<i64: 1, 8, 128>}, {transform_indices = @transform_6, window_bounds = array<i64: 1, 8, 128>}]} {
    %c0 = arith.constant 0 : index
    %c0_0 = arith.constant 0 : index
    %c0_1 = arith.constant 0 : index
    %0 = vector.load %arg2[%c0, %c0_0, %c0_1] : memref<1x4x128xbf16, #tpu.memory_space<vmem>>, vector<1x4x128xbf16>
    %1 = vector.shape_cast %0 : vector<1x4x128xbf16> to vector<4x128xbf16>
    %c0_2 = arith.constant 0 : index
    %c0_3 = arith.constant 0 : index
    %c0_4 = arith.constant 0 : index
    %2 = vector.load %arg3[%c0_2, %c0_3, %c0_4] : memref<1x4x128xbf16, #tpu.memory_space<vmem>>, vector<1x4x128xbf16>
    %3 = vector.shape_cast %2 : vector<1x4x128xbf16> to vector<4x128xbf16>
    %4 = tpu.concatenate %1, %3 in 1 : vector<4x128xbf16>, vector<4x128xbf16> -> vector<4x256xbf16>
    %cst = arith.constant 0.000000e+00 : bf16
    %5 = vector.broadcast %cst : bf16 to vector<4x256xbf16>
    %6 = arith.maximumf %4, %5 : vector<4x256xbf16>
    %cst_5 = arith.constant 0.000000e+00 : bf16
    %7 = vector.broadcast %cst_5 : bf16 to vector<4x256xbf16>
    %8 = arith.minimumf %4, %7 : vector<4x256xbf16>
    %cst_6 = arith.constant 0.000000e+00 : f32
    %9 = vector.broadcast %cst_6 : f32 to vector<24x128xf32>
    %c0_7 = arith.constant 0 : index
    %c0_8 = arith.constant 0 : index
    %c0_9 = arith.constant 0 : index
    %10 = vector.load %arg4[%c0_7, %c0_8, %c0_9] : memref<3x24x4xbf16, #tpu.memory_space<vmem>>, vector<1x24x4xbf16>
    %11 = vector.shape_cast %10 : vector<1x24x4xbf16> to vector<24x4xbf16>
    %12 = vector.extract_strided_slice %6 {offsets = [0, 0], sizes = [4, 128], strides = [1, 1]} : vector<4x256xbf16> to vector<4x128xbf16>
    %cst_10 = arith.constant dense<0.000000e+00> : vector<24x128xf32>
    %13 = tpu.matmul %11, %12, %cst_10 {dimension_numbers = #tpu.dot_dimension_numbers<[1], [0], [0], [1], [0, 0, 1, 1], [], []>} : vector<24x4xbf16>, vector<4x128xbf16>, vector<24x128xf32> -> vector<24x128xf32>
    %14 = arith.addf %9, %13 : vector<24x128xf32>
    %c0_11 = arith.constant 0 : index
    %c0_12 = arith.constant 0 : index
    %c0_13 = arith.constant 0 : index
    %15 = vector.load %arg5[%c0_11, %c0_12, %c0_13] : memref<3x24x4xbf16, #tpu.memory_space<vmem>>, vector<1x24x4xbf16>
    %16 = vector.shape_cast %15 : vector<1x24x4xbf16> to vector<24x4xbf16>
    %17 = vector.extract_strided_slice %8 {offsets = [0, 0], sizes = [4, 128], strides = [1, 1]} : vector<4x256xbf16> to vector<4x128xbf16>
    %cst_14 = arith.constant dense<0.000000e+00> : vector<24x128xf32>
    %18 = tpu.matmul %16, %17, %cst_14 {dimension_numbers = #tpu.dot_dimension_numbers<[1], [0], [0], [1], [0, 0, 1, 1], [], []>} : vector<24x4xbf16>, vector<4x128xbf16>, vector<24x128xf32> -> vector<24x128xf32>
    %19 = arith.addf %14, %18 : vector<24x128xf32>
    %c1 = arith.constant 1 : index
    %c0_15 = arith.constant 0 : index
    %c0_16 = arith.constant 0 : index
    %20 = vector.load %arg4[%c1, %c0_15, %c0_16] : memref<3x24x4xbf16, #tpu.memory_space<vmem>>, vector<1x24x4xbf16>
    %21 = vector.shape_cast %20 : vector<1x24x4xbf16> to vector<24x4xbf16>
    %22 = vector.extract_strided_slice %6 {offsets = [0, 1], sizes = [4, 128], strides = [1, 1]} : vector<4x256xbf16> to vector<4x128xbf16>
    %cst_17 = arith.constant dense<0.000000e+00> : vector<24x128xf32>
    %23 = tpu.matmul %21, %22, %cst_17 {dimension_numbers = #tpu.dot_dimension_numbers<[1], [0], [0], [1], [0, 0, 1, 1], [], []>} : vector<24x4xbf16>, vector<4x128xbf16>, vector<24x128xf32> -> vector<24x128xf32>
    %24 = arith.addf %19, %23 : vector<24x128xf32>
    %c1_18 = arith.constant 1 : index
    %c0_19 = arith.constant 0 : index
    %c0_20 = arith.constant 0 : index
    %25 = vector.load %arg5[%c1_18, %c0_19, %c0_20] : memref<3x24x4xbf16, #tpu.memory_space<vmem>>, vector<1x24x4xbf16>
    %26 = vector.shape_cast %25 : vector<1x24x4xbf16> to vector<24x4xbf16>
    %27 = vector.extract_strided_slice %8 {offsets = [0, 1], sizes = [4, 128], strides = [1, 1]} : vector<4x256xbf16> to vector<4x128xbf16>
    %cst_21 = arith.constant dense<0.000000e+00> : vector<24x128xf32>
    %28 = tpu.matmul %26, %27, %cst_21 {dimension_numbers = #tpu.dot_dimension_numbers<[1], [0], [0], [1], [0, 0, 1, 1], [], []>} : vector<24x4xbf16>, vector<4x128xbf16>, vector<24x128xf32> -> vector<24x128xf32>
    %29 = arith.addf %24, %28 : vector<24x128xf32>
    %c2 = arith.constant 2 : index
    %c0_22 = arith.constant 0 : index
    %c0_23 = arith.constant 0 : index
    %30 = vector.load %arg4[%c2, %c0_22, %c0_23] : memref<3x24x4xbf16, #tpu.memory_space<vmem>>, vector<1x24x4xbf16>
    %31 = vector.shape_cast %30 : vector<1x24x4xbf16> to vector<24x4xbf16>
    %32 = vector.extract_strided_slice %6 {offsets = [0, 2], sizes = [4, 128], strides = [1, 1]} : vector<4x256xbf16> to vector<4x128xbf16>
    %cst_24 = arith.constant dense<0.000000e+00> : vector<24x128xf32>
    %33 = tpu.matmul %31, %32, %cst_24 {dimension_numbers = #tpu.dot_dimension_numbers<[1], [0], [0], [1], [0, 0, 1, 1], [], []>} : vector<24x4xbf16>, vector<4x128xbf16>, vector<24x128xf32> -> vector<24x128xf32>
    %34 = arith.addf %29, %33 : vector<24x128xf32>
    %c2_25 = arith.constant 2 : index
    %c0_26 = arith.constant 0 : index
    %c0_27 = arith.constant 0 : index
    %35 = vector.load %arg5[%c2_25, %c0_26, %c0_27] : memref<3x24x4xbf16, #tpu.memory_space<vmem>>, vector<1x24x4xbf16>
    %36 = vector.shape_cast %35 : vector<1x24x4xbf16> to vector<24x4xbf16>
    %37 = vector.extract_strided_slice %8 {offsets = [0, 2], sizes = [4, 128], strides = [1, 1]} : vector<4x256xbf16> to vector<4x128xbf16>
    %cst_28 = arith.constant dense<0.000000e+00> : vector<24x128xf32>
    %38 = tpu.matmul %36, %37, %cst_28 {dimension_numbers = #tpu.dot_dimension_numbers<[1], [0], [0], [1], [0, 0, 1, 1], [], []>} : vector<24x4xbf16>, vector<4x128xbf16>, vector<24x128xf32> -> vector<24x128xf32>
    %39 = arith.addf %34, %38 : vector<24x128xf32>
    %c0_29 = arith.constant 0 : index
    %c0_30 = arith.constant 0 : index
    %40 = vector.load %arg6[%c0_29, %c0_30] : memref<24x1xf32, #tpu.memory_space<vmem>>, vector<24x1xf32>
    %41 = vector.broadcast %40 : vector<24x1xf32> to vector<24x128xf32>
    %42 = arith.addf %39, %41 : vector<24x128xf32>
    %43 = vector.extract_strided_slice %42 {offsets = [0, 0], sizes = [8, 128], strides = [1, 1]} : vector<24x128xf32> to vector<8x128xf32>
    %44 = vector.extract_strided_slice %42 {offsets = [8, 0], sizes = [8, 128], strides = [1, 1]} : vector<24x128xf32> to vector<8x128xf32>
    %45 = vector.extract_strided_slice %42 {offsets = [16, 0], sizes = [8, 128], strides = [1, 1]} : vector<24x128xf32> to vector<8x128xf32>
    %cst_31 = arith.constant 9.99999997E-7 : f32
    %46 = vector.broadcast %cst_31 : f32 to vector<8x128xf32>
    %47 = arith.cmpf ogt, %43, %46 : vector<8x128xf32>
    %cst_32 = arith.constant 9.99999997E-7 : f32
    %48 = vector.broadcast %cst_32 : f32 to vector<8x128xf32>
    %49 = arith.cmpf olt, %43, %48 : vector<8x128xf32>
    %cst_33 = arith.constant 0.000000e+00 : f32
    %50 = vector.broadcast %cst_33 : f32 to vector<8x128xf32>
    %51 = arith.select %49, %45, %50 : vector<8x128xi1>, vector<8x128xf32>
    %52 = arith.select %47, %44, %51 : vector<8x128xi1>, vector<8x128xf32>
    %53 = arith.truncf %43 : vector<8x128xf32> to vector<8x128xbf16>
    %c0_34 = arith.constant 0 : index
    %c0_35 = arith.constant 0 : index
    %c0_36 = arith.constant 0 : index
    %54 = vector.load %arg7[%c0_34, %c0_35, %c0_36] : memref<1x8x128xbf16, #tpu.memory_space<vmem>>, vector<1x8x128xbf16>
    %55 = vector.shape_cast %54 : vector<1x8x128xbf16> to vector<8x128xbf16>
    %56 = vector.shape_cast %53 : vector<8x128xbf16> to vector<1x8x128xbf16>
    tpu.vector_store %arg7[%c0_34, %c0_35, %c0_36], %56 {strides = array<i32>} : memref<1x8x128xbf16, #tpu.memory_space<vmem>>, vector<1x8x128xbf16>,
    %57 = arith.truncf %52 : vector<8x128xf32> to vector<8x128xbf16>
    %c0_37 = arith.constant 0 : index
    %c0_38 = arith.constant 0 : index
    %c0_39 = arith.constant 0 : index
    %58 = vector.load %arg8[%c0_37, %c0_38, %c0_39] : memref<1x8x128xbf16, #tpu.memory_space<vmem>>, vector<1x8x128xbf16>
    %59 = vector.shape_cast %58 : vector<1x8x128xbf16> to vector<8x128xbf16>
    %60 = vector.shape_cast %57 : vector<8x128xbf16> to vector<1x8x128xbf16>
    tpu.vector_store %arg8[%c0_37, %c0_38, %c0_39], %60 {strides = array<i32>} : memref<1x8x128xbf16, #tpu.memory_space<vmem>>, vector<1x8x128xbf16>,
    return
  }
  func.func @transform_0(%arg0: i32, %arg1: i32) -> (i32, i32, i32) {
    %c0_i32 = arith.constant 0 : i32
    %c0_i32_0 = arith.constant 0 : i32
    return %arg0, %c0_i32, %arg1 : i32, i32, i32
  }
  func.func @transform_1(%arg0: i32, %arg1: i32) -> (i32, i32, i32) {
    %c1_i32 = arith.constant 1 : i32
    %0 = arith.addi %arg1, %c1_i32 : i32
    %c1_i32_0 = arith.constant 1 : i32
    %1 = arith.muli %0, %c1_i32_0 : i32
    %c0_i32 = arith.constant 0 : i32
    %c0_i32_1 = arith.constant 0 : i32
    return %arg0, %c0_i32, %1 : i32, i32, i32
  }
  func.func @transform_2(%arg0: i32, %arg1: i32) -> (i32, i32, i32) {
    %c0_i32 = arith.constant 0 : i32
    %c0_i32_0 = arith.constant 0 : i32
    %c0_i32_1 = arith.constant 0 : i32
    %c0_i32_2 = arith.constant 0 : i32
    return %c0_i32, %c0_i32_0, %c0_i32_1 : i32, i32, i32
  }
  func.func @transform_3(%arg0: i32, %arg1: i32) -> (i32, i32, i32) {
    %c0_i32 = arith.constant 0 : i32
    %c0_i32_0 = arith.constant 0 : i32
    %c0_i32_1 = arith.constant 0 : i32
    %c0_i32_2 = arith.constant 0 : i32
    return %c0_i32, %c0_i32_0, %c0_i32_1 : i32, i32, i32
  }
  func.func @transform_4(%arg0: i32, %arg1: i32) -> (i32, i32) {
    %c0_i32 = arith.constant 0 : i32
    %c0_i32_0 = arith.constant 0 : i32
    %c0_i32_1 = arith.constant 0 : i32
    return %c0_i32, %c0_i32_0 : i32, i32
  }
  func.func @transform_5(%arg0: i32, %arg1: i32) -> (i32, i32, i32) {
    %c0_i32 = arith.constant 0 : i32
    %c0_i32_0 = arith.constant 0 : i32
    return %arg0, %c0_i32, %arg1 : i32, i32, i32
  }
  func.func @transform_6(%arg0: i32, %arg1: i32) -> (i32, i32, i32) {
    %c0_i32 = arith.constant 0 : i32
    %c0_i32_0 = arith.constant 0 : i32
    return %arg0, %c0_i32, %arg1 : i32, i32, i32
  }
}

</mosaic_0001>

<llo_original>
// kernel: modified_conv_gamma.1
$region0: #{modified_conv_gamma.1}
  #allocation0 [shape = 'u32[]', space=smem, size = 0x4, offset = 0x4, fixed_abs, tag = 'smem constant byte address 0x4 - core index']
  #allocation1 [shape = 'u32[144,128]{1,0:T(1,128)}', space=vmem, size = 0x12000, scoped, tag = 'internal scratch']
  %s0 = inlined_call_operand.vmem [shape: bf16[2,4,256], index: 0, kind: input, shape index: {}, may-alias: {0,1}]
  %s1 = inlined_call_operand.vmem [shape: bf16[2,4,256], index: 1, kind: input, shape index: {}, may-alias: {0,1}]
  %s2 = inlined_call_operand.vmem [shape: bf16[3,24,4], index: 2, kind: input, shape index: {}]
  %s3 = inlined_call_operand.vmem [shape: bf16[3,24,4], index: 3, kind: input, shape index: {}]
  %s4 = inlined_call_operand.vmem [shape: f32[24,1], index: 4, kind: input, shape index: {}]
  %s5 = inlined_call_operand.hbm [shape: bf16[2,8,128], index: 5, kind: output, shape index: {0}]
  %s6 = inlined_call_operand.hbm [shape: bf16[2,8,128], index: 6, kind: output, shape index: {1}]
  %7 = xla_tuple %s5, %s6
  %s8 = sld [smem:[#allocation0]]
  $region61: #{modified_conv_gamma.1} parent=0
    _
  %s10 = ssub.s32 1, %s8
  %s11 = scalar_select 0, %s10, %s8
  $region1: #{modified_conv_gamma.1} parent=0
    #allocation2 [shape = 'u8[4096]{0}', space=vmem, size = 0x1000, scoped, tag = 'output window, operand 0']
    #allocation3 [shape = 's32[2]{0}', space=sflag, size = 0x8, scoped, tag = 'scoped memory for modified_conv_gamma.1']
    #allocation4 [shape = 'u8[4096]{0}', space=vmem, size = 0x1000, scoped, tag = 'output window, operand 1']
    #allocation5 [shape = 's32[2]{0}', space=sflag, size = 0x8, scoped, tag = 'scoped memory for modified_conv_gamma.1']
    %12 = vsyncpa [#allocation3], 0
    %s13 = scalar_lea.sflag [#allocation3], 1
    %14 = vsyncpa %s13, 0
    %15 = vsyncpa [#allocation5], 0
    %s16 = scalar_lea.sflag [#allocation5], 1
    %17 = vsyncpa %s16, 0
    loop: start=0, step=1, limit=4
    $region2: #{modified_conv_gamma.1} parent=1 // loop_pre_header
      _
    $region3: #{modified_conv_gamma.1} parent=1 // loop_header
      %s19 = sphi 0, %s23
      %p20 = scmp.ge.s32.totalorder %s19, 4
      %s26 = sphi 0, %s38
      %s27 = sphi 0, %s34
      %s28 = sphi 0, %s26
      %s29 = sphi 0, %s27
      %s30 = sphi 0, %s28
      %s31 = sphi 0, %s29
      %s43 = sphi 0, %s45
      %s46 = sphi 0, %s43
      %s47 = sphi 0, %s46
      %s63 = sphi 0, %s47
      %s73 = sphi 0, %s75
      %s76 = sphi 0, %s73
      %s77 = sphi 0, %s76
      %s93 = sphi 0, %s77
      %s97 = sphi 0, %s97
      %s99 = sphi 0, %s97
      %s100 = sphi 0, %s99
      %s114 = sphi 0, %s100
      %s118 = sphi 0, %s118
      %s120 = sphi 0, %s118
      %s121 = sphi 0, %s120
      %s135 = sphi 0, %s121
      %s139 = sphi 0, %s139
      %s141 = sphi 0, %s139
      %s142 = sphi 0, %s141
      %s156 = sphi 0, %s142
      %s164 = sphi 0, %s166
      %s167 = sphi 0, %s164
      %s168 = sphi 0, %s167
      %s184 = sphi 0, %s168
      %s192 = sphi 0, %s194
      %s195 = sphi 0, %s192
      %s196 = sphi 0, %s195
      %s212 = sphi 0, %s196
    $region4: #{modified_conv_gamma.1} parent=1 // loop_header_branch
      %22 = sbr.rel (%p20) target = $region8
    $region5: #{modified_conv_gamma.1} parent=1 // loop_body
      %s24 = ssub.s32 %s19, 1
      %s25 = ssub.s32 %s19, 2
      %s32 = sadd.s32 1, %s27
      %p33 = scmp.ge.s32.totalorder %s32, 1
      %s34 = scalar_select %p33, 0, %s32
      %s35 = sadd.s32 1, %s26
      %s36 = scalar_select %p33, %s35, %s26
      %p37 = scmp.ge.s32.totalorder %s36, 2
      %s38 = scalar_select %p37, 0, %s36
      %s39 = ssub.s32 %s26, %s38
      %s40 = ssub.s32 %s27, %s34
      %s41 = sor.u32 %s39, %s40
      %p42 = scmp.eq.s32.totalorder %s41, 0
      %s44 = sadd.s32 %s43, 1
      %s45 = scalar_select %p42, %s43, %s44
      %p48 = pneg %p42
      %p49 = scmp.eq.s32.totalorder %s19, 1
      %p50 = por %p48, %p49
      %p51 = scmp.ne.s32.totalorder %s43, %s46
      %p52 = scmp.eq.s32.totalorder %s19, 0
      %p53 = por %p51, %p52
      %p54 = scmp.ne.s32.totalorder %s43, %s46
      %p55 = scmp.eq.s32.totalorder %s24, 1
      %p56 = por %p54, %p55
      %p57 = scmp.ne.s32.totalorder %s46, %s47
      %p58 = scmp.eq.s32.totalorder %s24, 0
      %p59 = por %p57, %p58
      %p60 = scmp.ne.s32.totalorder %s46, %s47
      %p61 = scmp.eq.s32.totalorder %s25, 1
      %p62 = por %p60, %p61
      %p64 = scmp.ne.s32.totalorder %s47, %s63
      %p65 = scmp.eq.s32.totalorder %s25, 0
      %p66 = por %p64, %p65
      %s67 = sadd.s32 %s27, 1
      %s68 = sadd.s32 %s34, 1
      %s69 = ssub.s32 %s26, %s38
      %s70 = ssub.s32 %s67, %s68
      %s71 = sor.u32 %s69, %s70
      %p72 = scmp.eq.s32.totalorder %s71, 0
      %s74 = sadd.s32 %s73, 1
      %s75 = scalar_select %p72, %s73, %s74
      %p78 = pneg %p72
      %p79 = scmp.eq.s32.totalorder %s19, 1
      %p80 = por %p78, %p79
      %p81 = scmp.ne.s32.totalorder %s73, %s76
      %p82 = scmp.eq.s32.totalorder %s19, 0
      %p83 = por %p81, %p82
      %p84 = scmp.ne.s32.totalorder %s73, %s76
      %p85 = scmp.eq.s32.totalorder %s24, 1
      %p86 = por %p84, %p85
      %p87 = scmp.ne.s32.totalorder %s76, %s77
      %p88 = scmp.eq.s32.totalorder %s24, 0
      %p89 = por %p87, %p88
      %p90 = scmp.ne.s32.totalorder %s76, %s77
      %p91 = scmp.eq.s32.totalorder %s25, 1
      %p92 = por %p90, %p91
      %p94 = scmp.ne.s32.totalorder %s77, %s93
      %p95 = scmp.eq.s32.totalorder %s25, 0
      %p96 = por %p94, %p95
      %s98 = sadd.s32 %s97, 1
      %p101 = scmp.eq.s32.totalorder %s19, 1
      %p102 = scmp.ne.s32.totalorder %s97, %s99
      %p103 = scmp.eq.s32.totalorder %s19, 0
      %p104 = por %p102, %p103
      %p105 = scmp.ne.s32.totalorder %s97, %s99
      %p106 = scmp.eq.s32.totalorder %s24, 1
      %p107 = por %p105, %p106
      %p108 = scmp.ne.s32.totalorder %s99, %s100
      %p109 = scmp.eq.s32.totalorder %s24, 0
      %p110 = por %p108, %p109
      %p111 = scmp.ne.s32.totalorder %s99, %s100
      %p112 = scmp.eq.s32.totalorder %s25, 1
      %p113 = por %p111, %p112
      %p115 = scmp.ne.s32.totalorder %s100, %s114
      %p116 = scmp.eq.s32.totalorder %s25, 0
      %p117 = por %p115, %p116
      %s119 = sadd.s32 %s118, 1
      %p122 = scmp.eq.s32.totalorder %s19, 1
      %p123 = scmp.ne.s32.totalorder %s118, %s120
      %p124 = scmp.eq.s32.totalorder %s19, 0
      %p125 = por %p123, %p124
      %p126 = scmp.ne.s32.totalorder %s118, %s120
      %p127 = scmp.eq.s32.totalorder %s24, 1
      %p128 = por %p126, %p127
      %p129 = scmp.ne.s32.totalorder %s120, %s121
      %p130 = scmp.eq.s32.totalorder %s24, 0
      %p131 = por %p129, %p130
      %p132 = scmp.ne.s32.totalorder %s120, %s121
      %p133 = scmp.eq.s32.totalorder %s25, 1
      %p134 = por %p132, %p133
      %p136 = scmp.ne.s32.totalorder %s121, %s135
      %p137 = scmp.eq.s32.totalorder %s25, 0
      %p138 = por %p136, %p137
      %s140 = sadd.s32 %s139, 1
      %p143 = scmp.eq.s32.totalorder %s19, 1
      %p144 = scmp.ne.s32.totalorder %s139, %s141
      %p145 = scmp.eq.s32.totalorder %s19, 0
      %p146 = por %p144, %p145
      %p147 = scmp.ne.s32.totalorder %s139, %s141
      %p148 = scmp.eq.s32.totalorder %s24, 1
      %p149 = por %p147, %p148
      %p150 = scmp.ne.s32.totalorder %s141, %s142
      %p151 = scmp.eq.s32.totalorder %s24, 0
      %p152 = por %p150, %p151
      %p153 = scmp.ne.s32.totalorder %s141, %s142
      %p154 = scmp.eq.s32.totalorder %s25, 1
      %p155 = por %p153, %p154
      %p157 = scmp.ne.s32.totalorder %s142, %s156
      %p158 = scmp.eq.s32.totalorder %s25, 0
      %p159 = por %p157, %p158
      %s160 = ssub.s32 %s26, %s38
      %s161 = ssub.s32 %s27, %s34
      %s162 = sor.u32 %s160, %s161
      %p163 = scmp.eq.s32.totalorder %s162, 0
      %s165 = sadd.s32 %s164, 1
      %s166 = scalar_select %p163, %s164, %s165
      %p169 = pneg %p163
      %p170 = scmp.eq.s32.totalorder %s19, 1
      %p171 = por %p169, %p170
      %p172 = scmp.ne.s32.totalorder %s164, %s167
      %p173 = scmp.eq.s32.totalorder %s19, 0
      %p174 = por %p172, %p173
      %p175 = scmp.ne.s32.totalorder %s164, %s167
      %p176 = scmp.eq.s32.totalorder %s24, 1
      %p177 = por %p175, %p176
      %p178 = scmp.ne.s32.totalorder %s167, %s168
      %p179 = scmp.eq.s32.totalorder %s24, 0
      %p180 = por %p178, %p179
      %p181 = scmp.ne.s32.totalorder %s167, %s168
      %p182 = scmp.eq.s32.totalorder %s25, 1
      %p183 = por %p181, %p182
      %p185 = scmp.ne.s32.totalorder %s168, %s184
      %p186 = scmp.eq.s32.totalorder %s25, 0
      %p187 = por %p185, %p186
      %s188 = ssub.s32 %s26, %s38
      %s189 = ssub.s32 %s27, %s34
      %s190 = sor.u32 %s188, %s189
      %p191 = scmp.eq.s32.totalorder %s190, 0
      %s193 = sadd.s32 %s192, 1
      %s194 = scalar_select %p191, %s192, %s193
      %p197 = pneg %p191
      %p198 = scmp.eq.s32.totalorder %s19, 1
      %p199 = por %p197, %p198
      %p200 = scmp.ne.s32.totalorder %s192, %s195
      %p201 = scmp.eq.s32.totalorder %s19, 0
      %p202 = por %p200, %p201
      %p203 = scmp.ne.s32.totalorder %s192, %s195
      %p204 = scmp.eq.s32.totalorder %s24, 1
      %p205 = por %p203, %p204
      %p206 = scmp.ne.s32.totalorder %s195, %s196
      %p207 = scmp.eq.s32.totalorder %s24, 0
      %p208 = por %p206, %p207
      %p209 = scmp.ne.s32.totalorder %s195, %s196
      %p210 = scmp.eq.s32.totalorder %s25, 1
      %p211 = por %p209, %p210
      %p213 = scmp.ne.s32.totalorder %s196, %s212
      %p214 = scmp.eq.s32.totalorder %s25, 0
      %p215 = por %p213, %p214
      %p216 = scmp.le.s32.totalorder 1, %s19
      %p217 = scmp.lt.s32.totalorder %s19, 3
      %p218 = pnand %p216, %p217
      %p219 = pneg %p218
      // Predicated region
      $region9: #{modified_conv_gamma.1} parent=5 // pred_check
        _
      $region10: #{modified_conv_gamma.1} parent=5 // pred_check_branch
        %221 = sbr.rel (%p218) target = $region12
      $region11: #{modified_conv_gamma.1} parent=5 // pred_region
        %s222 = ssub.s32 %s19, 1
        // Predicated region
        $region13: #{modified_conv_gamma.1} parent=11 // pred_check
          %p223 = pneg %p110
        $region14: #{modified_conv_gamma.1} parent=11 // pred_check_branch
          %225 = sbr.rel (%p223) target = $region16
        $region15: #{modified_conv_gamma.1} parent=11 // pred_region
          _
        $region16: #{modified_conv_gamma.1} parent=11 // pred_fallthru
          _
        // Predicated region
        $region17: #{modified_conv_gamma.1} parent=11 // pred_check
          %p226 = pneg %p131
        $region18: #{modified_conv_gamma.1} parent=11 // pred_check_branch
          %228 = sbr.rel (%p226) target = $region20
        $region19: #{modified_conv_gamma.1} parent=11 // pred_region
          _
        $region20: #{modified_conv_gamma.1} parent=11 // pred_fallthru
          _
        // Predicated region
        $region21: #{modified_conv_gamma.1} parent=11 // pred_check
          %p229 = pneg %p152
        $region22: #{modified_conv_gamma.1} parent=11 // pred_check_branch
          %231 = sbr.rel (%p229) target = $region24
        $region23: #{modified_conv_gamma.1} parent=11 // pred_region
          _
        $region24: #{modified_conv_gamma.1} parent=11 // pred_fallthru
          _
      $region12: #{modified_conv_gamma.1} parent=5 // pred_fallthru
        _
      %p232 = scmp.lt.s32.totalorder %s19, 2
      // Predicated region
      $region25: #{modified_conv_gamma.1} parent=5 // pred_check
        %p233 = pneg %p232
      $region26: #{modified_conv_gamma.1} parent=5 // pred_check_branch
        %235 = sbr.rel (%p233) target = $region28
      $region27: #{modified_conv_gamma.1} parent=5 // pred_region
        // Predicated region
        $region29: #{modified_conv_gamma.1} parent=27 // pred_check
          %p236 = pneg %p53
        $region30: #{modified_conv_gamma.1} parent=27 // pred_check_branch
          %238 = sbr.rel (%p236) target = $region32
        $region31: #{modified_conv_gamma.1} parent=27 // pred_region
          %p239 = scmp.lt.s32.totalorder %s26, 1
          %s240 = scalar_select %p239, %s26, 1
          %p241 = scmp.lt.s32.totalorder %s27, 1
          %s242 = scalar_select %p241, %s27, 1
          %s243 = smul.addr %s240, 2
          %s244 = sadd.s32 %s242, %s243
          %s245 = smul.addr %s244, 2
          %s246 = scalar_lea.vmem %s0, %s245
        $region32: #{modified_conv_gamma.1} parent=27 // pred_fallthru
          _
        // Predicated region
        $region33: #{modified_conv_gamma.1} parent=27 // pred_check
          %p247 = pneg %p83
        $region34: #{modified_conv_gamma.1} parent=27 // pred_check_branch
          %249 = sbr.rel (%p247) target = $region36
        $region35: #{modified_conv_gamma.1} parent=27 // pred_region
          %s250 = sadd.s32 %s27, 1
          %p251 = scmp.lt.s32.totalorder %s26, 1
          %s252 = scalar_select %p251, %s26, 1
          %p253 = scmp.lt.s32.totalorder %s250, 1
          %s254 = scalar_select %p253, %s250, 1
          %s255 = smul.addr %s252, 2
          %s256 = sadd.s32 %s254, %s255
          %s257 = smul.addr %s256, 2
          %s258 = scalar_lea.vmem %s1, %s257
          %s259 = sadd.s32 %s27, 1
        $region36: #{modified_conv_gamma.1} parent=27 // pred_fallthru
          _
      $region28: #{modified_conv_gamma.1} parent=5 // pred_fallthru
        _
      %p260 = scmp.le.s32.totalorder 1, %s19
      %p261 = scmp.lt.s32.totalorder %s19, 3
      %p262 = pnand %p260, %p261
      %p263 = pneg %p262
      // Predicated region
      $region37: #{modified_conv_gamma.1} parent=5 // pred_check
        _
      $region38: #{modified_conv_gamma.1} parent=5 // pred_check_branch
        %265 = sbr.rel (%p262) target = $region40
      $region39: #{modified_conv_gamma.1} parent=5 // pred_region
        %s266 = ssub.s32 %s19, 1
        %p267 = scmp.lt.s32.totalorder %s28, 1
        %s268 = scalar_select %p267, %s28, 1
        %p269 = scmp.lt.s32.totalorder %s29, 1
        %s270 = scalar_select %p269, %s29, 1
        %s271 = smul.addr %s268, 2
        %s272 = sadd.s32 %s270, %s271
        %s273 = smul.addr %s272, 2
        %s274 = scalar_lea.vmem %s0, %s273
        %p275 = pneg %p59
        %p276 = pneg %p56
        %s277 = sadd.s32 %s29, 1
        %p278 = scmp.lt.s32.totalorder %s28, 1
        %s279 = scalar_select %p278, %s28, 1
        %p280 = scmp.lt.s32.totalorder %s277, 1
        %s281 = scalar_select %p280, %s277, 1
        %s282 = smul.addr %s279, 2
        %s283 = sadd.s32 %s281, %s282
        %s284 = smul.addr %s283, 2
        %s285 = scalar_lea.vmem %s1, %s284
        %p286 = pneg %p89
        %p287 = pneg %p86
        %p288 = pneg %p110
        %p289 = pneg %p107
        %p290 = pneg %p131
        %p291 = pneg %p128
        %p292 = pneg %p152
        %p293 = pneg %p149
        %p294 = pneg %p180
        %p295 = pneg %p177
        %s296 = sand.u32 %s167, 1
        %s297 = scalar_lea.sflag [#allocation3], %s296
        %s298 = sand.u32 %s167, 1
        %s299 = smul.addr %s298, 4
        %s300 = scalar_lea.vmem [#allocation2], %s299
        %p301 = pneg %p208
        %p302 = pneg %p205
        %s303 = sand.u32 %s195, 1
        %s304 = scalar_lea.sflag [#allocation5], %s303
        %s305 = sand.u32 %s195, 1
        %s306 = smul.addr %s305, 4
        %s307 = scalar_lea.vmem [#allocation4], %s306
        %p308 = scmp.lt.s32.totalorder %s28, 1
        %s309 = scalar_select %p308, %s28, 1
        %p310 = scmp.lt.s32.totalorder %s29, 1
        %s311 = scalar_select %p310, %s29, 1
        %s312 = smul.addr %s309, 2
        %s313 = sadd.s32 %s311, %s312
        %s314 = smul.addr %s313, 2
        %s315 = scalar_lea.vmem %s0, %s314
        %s316 = sadd.s32 %s29, 1
        %p317 = scmp.lt.s32.totalorder %s28, 1
        %s318 = scalar_select %p317, %s28, 1
        %p319 = scmp.lt.s32.totalorder %s316, 1
        %s320 = scalar_select %p319, %s316, 1
        %s321 = smul.addr %s318, 2
        %s322 = sadd.s32 %s320, %s321
        %s323 = smul.addr %s322, 2
        %s324 = scalar_lea.vmem %s1, %s323
        %s325 = sadd.s32 %s29, 1
        %v327 = vld [vmem:[%s315] sm:$0x3]
        %v328 = vld [vmem:[%s324] sm:$0x3]
        %v329 = vmax.bf16 %v327, 0
        %v330 = vmax.bf16 %v328, 0
        %v331 = vmin.bf16 %v327, 0
        %v332 = vmin.bf16 %v328, 0
        %v333 = vld [vmem:[%s2] sm:$0xf]
        %v334 = vld [vmem:[%s2 + $0x4] sm:$0xf]
        %v335 = vld [vmem:[%s2 + $0x8] sm:$0xf]
        %v336 = vld [vmem:[%s3] sm:$0xf]
        %v337 = vld [vmem:[%s3 + $0x4] sm:$0xf]
        %v338 = vld [vmem:[%s3 + $0x8] sm:$0xf]
        %v342 = vunpack.c.l.b16 %v336
        %v343 = vunpack.c.l.b16 %v337
        %v344 = vunpack.c.l.b16 %v338
        %v345 = vpack.c.b16 %v343, %v342
        %v346 = vpack.c.b16 %v344, %v344
        %vm347 = vcmask 31744
        %v349 = vsel %vm347, %v345, 0
        %v352 = vsel %vm347, %v346, 0
        %vm354 = vcmask 1041408
        %v356 = vsel %vm354, %v331, 0
        %358 = vmatprep.subr.bf16.mxu0 0
        %359 = vmatpush1.bf16.msra.mxu0 0
        %360 = vmatprep.subr.bf16.mxu0 0
        %361 = vmatpush1.bf16.msra.mxu0 0
        %362 = vmatprep.subr.bf16.mxu0 0
        %363 = vmatpush1.bf16.msra.mxu0 0
        %364 = vmatprep.subr.bf16.mxu0 0
        %365 = vmatpush1.bf16.msra.mxu0 0
        %366 = vmatprep.subr.bf16.mxu0 0
        %367 = vmatpush1.bf16.msra.mxu0 0
        %368 = vmatprep.subr.bf16.mxu0 0
        %369 = vmatpush1.bf16.msra.mxu0 0
        %370 = vmatprep.subr.bf16.mxu0 0
        %371 = vmatpush1.bf16.msra.mxu0 0
        %372 = vmatprep.subr.bf16.mxu0 0
        %373 = vmatpush1.bf16.msra.mxu0 %v356
        %374 = vmatprep.subr.bf16.mxu0 0
        %375 = vmatpush2.bf16.msra.mxu0 0
        %376 = vmatprep.subr.bf16.mxu0 0
        %377 = vmatpush2.bf16.msra.mxu0 0
        %378 = vmatprep.subr.bf16.mxu0 0
        %379 = vmatpush2.bf16.msra.mxu0 0
        %380 = vmatprep.subr.bf16.mxu0 0
        %381 = vmatpush2.bf16.msra.mxu0 0
        %382 = vmatprep.subr.bf16.mxu0 0
        %383 = vmatpush2.bf16.msra.mxu0 0
        %384 = vmatprep.subr.bf16.mxu0 0
        %385 = vmatpush2.bf16.msra.mxu0 0
        %386 = vmatprep.subr.bf16.mxu0 0
        %387 = vmatpush2.bf16.msra.mxu0 0
        %388 = vmatprep.subr.bf16.mxu0 0
        %389 = vmatpush2.bf16.msra.mxu0 0
        %390 = vmatprep.mubr.bf16.mxu0 0
        %391 = vmatmul.mubr.bf16.gmra.mxu0 %v349
        %v392 = vpop.f32.mrf.mxu0
        %v393 = vadd.f32 0.0, %v392
        %v394 = vpop.f32.mrf.mxu0
        %v395 = vpop.f32.mrf.mxu0
        %v396 = vadd.f32 0.0, %v395
        %v397 = vpop.f32.mrf.mxu0
        %398 = vmatprep.mubr.bf16.mxu0 0
        %399 = vmatmul.mubr.bf16.gmra.mxu0 %v352
        %v400 = vpop.f32.mrf.mxu0
        %v401 = vadd.f32 0.0, %v400
        %v402 = vpop.f32.mrf.mxu0
        %v403 = vpop.f32.mrf.mxu0
        %v404 = vpop.f32.mrf.mxu0
        %405 = vdwg.mxu0
        %v409 = vunpack.c.l.b16 %v333
        %v410 = vunpack.c.l.b16 %v334
        %v411 = vunpack.c.l.b16 %v335
        %v412 = vpack.c.b16 %v410, %v409
        %v413 = vpack.c.b16 %v411, %v411
        %v415 = vsel %vm347, %v412, 0
        %v418 = vsel %vm347, %v413, 0
        %v421 = vsel %vm354, %v329, 0
        %423 = vmatprep.subr.bf16.mxu0 0
        %424 = vmatpush1.bf16.msra.mxu0 0
        %425 = vmatprep.subr.bf16.mxu0 0
        %426 = vmatpush1.bf16.msra.mxu0 0
        %427 = vmatprep.subr.bf16.mxu0 0
        %428 = vmatpush1.bf16.msra.mxu0 0
        %429 = vmatprep.subr.bf16.mxu0 0
        %430 = vmatpush1.bf16.msra.mxu0 0
        %431 = vmatprep.subr.bf16.mxu0 0
        %432 = vmatpush1.bf16.msra.mxu0 0
        %433 = vmatprep.subr.bf16.mxu0 0
        %434 = vmatpush1.bf16.msra.mxu0 0
        %435 = vmatprep.subr.bf16.mxu0 0
        %436 = vmatpush1.bf16.msra.mxu0 0
        %437 = vmatprep.subr.bf16.mxu0 0
        %438 = vmatpush1.bf16.msra.mxu0 %v421
        %439 = vmatprep.subr.bf16.mxu0 0
        %440 = vmatpush2.bf16.msra.mxu0 0
        %441 = vmatprep.subr.bf16.mxu0 0
        %442 = vmatpush2.bf16.msra.mxu0 0
        %443 = vmatprep.subr.bf16.mxu0 0
        %444 = vmatpush2.bf16.msra.mxu0 0
        %445 = vmatprep.subr.bf16.mxu0 0
        %446 = vmatpush2.bf16.msra.mxu0 0
        %447 = vmatprep.subr.bf16.mxu0 0
        %448 = vmatpush2.bf16.msra.mxu0 0
        %449 = vmatprep.subr.bf16.mxu0 0
        %450 = vmatpush2.bf16.msra.mxu0 0
        %451 = vmatprep.subr.bf16.mxu0 0
        %452 = vmatpush2.bf16.msra.mxu0 0
        %453 = vmatprep.subr.bf16.mxu0 0
        %454 = vmatpush2.bf16.msra.mxu0 0
        %455 = vmatprep.mubr.bf16.mxu0 0
        %456 = vmatmul.mubr.bf16.gmra.mxu0 %v415
        %v457 = vpop.f32.mrf.mxu0
        %v458 = vadd.f32 %v393, %v457
        %v459 = vpop.f32.mrf.mxu0
        %v460 = vpop.f32.mrf.mxu0
        %v461 = vadd.f32 %v396, %v460
        %v462 = vpop.f32.mrf.mxu0
        %463 = vmatprep.mubr.bf16.mxu0 0
        %464 = vmatmul.mubr.bf16.gmra.mxu0 %v418
        %v465 = vpop.f32.mrf.mxu0
        %v466 = vadd.f32 %v401, %v465
        %v467 = vpop.f32.mrf.mxu0
        %v468 = vpop.f32.mrf.mxu0
        %v469 = vpop.f32.mrf.mxu0
        %470 = vdwg.mxu0
        %s471 = scalar_lea.vmem %s2, 12
        %v472 = vld [vmem:[%s471] sm:$0xf]
        %v473 = vld [vmem:[%s471 + $0x4] sm:$0xf]
        %v474 = vld [vmem:[%s471 + $0x8] sm:$0xf]
        %v478 = vunpack.c.l.b16 %v472
        %v479 = vunpack.c.l.b16 %v473
        %v480 = vunpack.c.l.b16 %v474
        %v481 = vpack.c.b16 %v479, %v478
        %v482 = vpack.c.b16 %v480, %v480
        %485 = vrot.lane.b32.xlu0 %v329, 127
        %v486 = vpop.permute.xlu0 %485
        %487 = vrot.lane.b32.xlu0 %v330, 127
        %v488 = vpop.permute.xlu0 %487
        %vm489 = vcmask 1039360
        %v490 = vsel %vm489, %v486, %v488
        %v492 = vsel %vm347, %v481, 0
        %v495 = vsel %vm347, %v482, 0
        %v498 = vsel %vm354, %v490, 0
        %500 = vmatprep.subr.bf16.mxu0 0
        %501 = vmatpush1.bf16.msra.mxu0 0
        %502 = vmatprep.subr.bf16.mxu0 0
        %503 = vmatpush1.bf16.msra.mxu0 0
        %504 = vmatprep.subr.bf16.mxu0 0
        %505 = vmatpush1.bf16.msra.mxu0 0
        %506 = vmatprep.subr.bf16.mxu0 0
        %507 = vmatpush1.bf16.msra.mxu0 0
        %508 = vmatprep.subr.bf16.mxu0 0
        %509 = vmatpush1.bf16.msra.mxu0 0
        %510 = vmatprep.subr.bf16.mxu0 0
        %511 = vmatpush1.bf16.msra.mxu0 0
        %512 = vmatprep.subr.bf16.mxu0 0
        %513 = vmatpush1.bf16.msra.mxu0 0
        %514 = vmatprep.subr.bf16.mxu0 0
        %515 = vmatpush1.bf16.msra.mxu0 %v498
        %516 = vmatprep.subr.bf16.mxu0 0
        %517 = vmatpush2.bf16.msra.mxu0 0
        %518 = vmatprep.subr.bf16.mxu0 0
        %519 = vmatpush2.bf16.msra.mxu0 0
        %520 = vmatprep.subr.bf16.mxu0 0
        %521 = vmatpush2.bf16.msra.mxu0 0
        %522 = vmatprep.subr.bf16.mxu0 0
        %523 = vmatpush2.bf16.msra.mxu0 0
        %524 = vmatprep.subr.bf16.mxu0 0
        %525 = vmatpush2.bf16.msra.mxu0 0
        %526 = vmatprep.subr.bf16.mxu0 0
        %527 = vmatpush2.bf16.msra.mxu0 0
        %528 = vmatprep.subr.bf16.mxu0 0
        %529 = vmatpush2.bf16.msra.mxu0 0
        %530 = vmatprep.subr.bf16.mxu0 0
        %531 = vmatpush2.bf16.msra.mxu0 0
        %532 = vmatprep.mubr.bf16.mxu0 0
        %533 = vmatmul.mubr.bf16.gmra.mxu0 %v492
        %v534 = vpop.f32.mrf.mxu0
        %v535 = vadd.f32 0.0, %v534
        %v536 = vpop.f32.mrf.mxu0
        %v537 = vpop.f32.mrf.mxu0
        %v538 = vadd.f32 0.0, %v537
        %v539 = vpop.f32.mrf.mxu0
        %540 = vmatprep.mubr.bf16.mxu0 0
        %541 = vmatmul.mubr.bf16.gmra.mxu0 %v495
        %v542 = vpop.f32.mrf.mxu0
        %v543 = vadd.f32 0.0, %v542
        %v544 = vpop.f32.mrf.mxu0
        %v545 = vpop.f32.mrf.mxu0
        %v546 = vpop.f32.mrf.mxu0
        %547 = vdwg.mxu0
        %v548 = vadd.f32 %v458, %v535
        %v549 = vadd.f32 %v461, %v538
        %v550 = vadd.f32 %v466, %v543
        %s551 = scalar_lea.vmem %s3, 12
        %v552 = vld [vmem:[%s551] sm:$0xf]
        %v553 = vld [vmem:[%s551 + $0x4] sm:$0xf]
        %v554 = vld [vmem:[%s551 + $0x8] sm:$0xf]
        %v558 = vunpack.c.l.b16 %v552
        %v559 = vunpack.c.l.b16 %v553
        %v560 = vunpack.c.l.b16 %v554
        %v561 = vpack.c.b16 %v559, %v558
        %v562 = vpack.c.b16 %v560, %v560
        %565 = vrot.lane.b32.xlu0 %v331, 127
        %v566 = vpop.permute.xlu0 %565
        %567 = vrot.lane.b32.xlu0 %v332, 127
        %v568 = vpop.permute.xlu0 %567
        %v569 = vsel %vm489, %v566, %v568
        %v571 = vsel %vm347, %v561, 0
        %v574 = vsel %vm347, %v562, 0
        %v577 = vsel %vm354, %v569, 0
        %579 = vmatprep.subr.bf16.mxu0 0
        %580 = vmatpush1.bf16.msra.mxu0 0
        %581 = vmatprep.subr.bf16.mxu0 0
        %582 = vmatpush1.bf16.msra.mxu0 0
        %583 = vmatprep.subr.bf16.mxu0 0
        %584 = vmatpush1.bf16.msra.mxu0 0
        %585 = vmatprep.subr.bf16.mxu0 0
        %586 = vmatpush1.bf16.msra.mxu0 0
        %587 = vmatprep.subr.bf16.mxu0 0
        %588 = vmatpush1.bf16.msra.mxu0 0
        %589 = vmatprep.subr.bf16.mxu0 0
        %590 = vmatpush1.bf16.msra.mxu0 0
        %591 = vmatprep.subr.bf16.mxu0 0
        %592 = vmatpush1.bf16.msra.mxu0 0
        %593 = vmatprep.subr.bf16.mxu0 0
        %594 = vmatpush1.bf16.msra.mxu0 %v577
        %595 = vmatprep.subr.bf16.mxu0 0
        %596 = vmatpush2.bf16.msra.mxu0 0
        %597 = vmatprep.subr.bf16.mxu0 0
        %598 = vmatpush2.bf16.msra.mxu0 0
        %599 = vmatprep.subr.bf16.mxu0 0
        %600 = vmatpush2.bf16.msra.mxu0 0
        %601 = vmatprep.subr.bf16.mxu0 0
        %602 = vmatpush2.bf16.msra.mxu0 0
        %603 = vmatprep.subr.bf16.mxu0 0
        %604 = vmatpush2.bf16.msra.mxu0 0
        %605 = vmatprep.subr.bf16.mxu0 0
        %606 = vmatpush2.bf16.msra.mxu0 0
        %607 = vmatprep.subr.bf16.mxu0 0
        %608 = vmatpush2.bf16.msra.mxu0 0
        %609 = vmatprep.subr.bf16.mxu0 0
        %610 = vmatpush2.bf16.msra.mxu0 0
        %611 = vmatprep.mubr.bf16.mxu0 0
        %612 = vmatmul.mubr.bf16.gmra.mxu0 %v571
        %v613 = vpop.f32.mrf.mxu0
        %v614 = vadd.f32 0.0, %v613
        %v615 = vpop.f32.mrf.mxu0
        %v616 = vpop.f32.mrf.mxu0
        %v617 = vadd.f32 0.0, %v616
        %v618 = vpop.f32.mrf.mxu0
        %619 = vmatprep.mubr.bf16.mxu0 0
        %620 = vmatmul.mubr.bf16.gmra.mxu0 %v574
        %v621 = vpop.f32.mrf.mxu0
        %v622 = vadd.f32 0.0, %v621
        %v623 = vpop.f32.mrf.mxu0
        %v624 = vpop.f32.mrf.mxu0
        %v625 = vpop.f32.mrf.mxu0
        %626 = vdwg.mxu0
        %v627 = vadd.f32 %v548, %v614
        %v628 = vadd.f32 %v549, %v617
        %v629 = vadd.f32 %v550, %v622
        %s630 = scalar_lea.vmem %s2, 24
        %v631 = vld [vmem:[%s630] sm:$0xf]
        %v632 = vld [vmem:[%s630 + $0x4] sm:$0xf]
        %v633 = vld [vmem:[%s630 + $0x8] sm:$0xf]
        %v637 = vunpack.c.l.b16 %v631
        %v638 = vunpack.c.l.b16 %v632
        %v639 = vunpack.c.l.b16 %v633
        %v640 = vpack.c.b16 %v638, %v637
        %v641 = vpack.c.b16 %v639, %v639
        %642 = vrot.lane.b32.xlu0 %v329, 126
        %v643 = vpop.permute.xlu0 %642
        %644 = vrot.lane.b32.xlu0 %v330, 126
        %v645 = vpop.permute.xlu0 %644
        %vm646 = vcmask 1031168
        %v647 = vsel %vm646, %v643, %v645
        %v649 = vsel %vm347, %v640, 0
        %v652 = vsel %vm347, %v641, 0
        %v655 = vsel %vm354, %v647, 0
        %657 = vmatprep.subr.bf16.mxu0 0
        %658 = vmatpush1.bf16.msra.mxu0 0
        %659 = vmatprep.subr.bf16.mxu0 0
        %660 = vmatpush1.bf16.msra.mxu0 0
        %661 = vmatprep.subr.bf16.mxu0 0
        %662 = vmatpush1.bf16.msra.mxu0 0
        %663 = vmatprep.subr.bf16.mxu0 0
        %664 = vmatpush1.bf16.msra.mxu0 0
        %665 = vmatprep.subr.bf16.mxu0 0
        %666 = vmatpush1.bf16.msra.mxu0 0
        %667 = vmatprep.subr.bf16.mxu0 0
        %668 = vmatpush1.bf16.msra.mxu0 0
        %669 = vmatprep.subr.bf16.mxu0 0
        %670 = vmatpush1.bf16.msra.mxu0 0
        %671 = vmatprep.subr.bf16.mxu0 0
        %672 = vmatpush1.bf16.msra.mxu0 %v655
        %673 = vmatprep.subr.bf16.mxu0 0
        %674 = vmatpush2.bf16.msra.mxu0 0
        %675 = vmatprep.subr.bf16.mxu0 0
        %676 = vmatpush2.bf16.msra.mxu0 0
        %677 = vmatprep.subr.bf16.mxu0 0
        %678 = vmatpush2.bf16.msra.mxu0 0
        %679 = vmatprep.subr.bf16.mxu0 0
        %680 = vmatpush2.bf16.msra.mxu0 0
        %681 = vmatprep.subr.bf16.mxu0 0
        %682 = vmatpush2.bf16.msra.mxu0 0
        %683 = vmatprep.subr.bf16.mxu0 0
        %684 = vmatpush2.bf16.msra.mxu0 0
        %685 = vmatprep.subr.bf16.mxu0 0
        %686 = vmatpush2.bf16.msra.mxu0 0
        %687 = vmatprep.subr.bf16.mxu0 0
        %688 = vmatpush2.bf16.msra.mxu0 0
        %689 = vmatprep.mubr.bf16.mxu0 0
        %690 = vmatmul.mubr.bf16.gmra.mxu0 %v649
        %v691 = vpop.f32.mrf.mxu0
        %v692 = vadd.f32 0.0, %v691
        %v693 = vpop.f32.mrf.mxu0
        %v694 = vpop.f32.mrf.mxu0
        %v695 = vadd.f32 0.0, %v694
        %v696 = vpop.f32.mrf.mxu0
        %697 = vmatprep.mubr.bf16.mxu0 0
        %698 = vmatmul.mubr.bf16.gmra.mxu0 %v652
        %v699 = vpop.f32.mrf.mxu0
        %v700 = vadd.f32 0.0, %v699
        %v701 = vpop.f32.mrf.mxu0
        %v702 = vpop.f32.mrf.mxu0
        %v703 = vpop.f32.mrf.mxu0
        %704 = vdwg.mxu0
        %v705 = vadd.f32 %v627, %v692
        %v706 = vadd.f32 %v628, %v695
        %v707 = vadd.f32 %v629, %v700
        %s708 = scalar_lea.vmem %s3, 24
        %v709 = vld [vmem:[%s708] sm:$0xf]
        %v710 = vld [vmem:[%s708 + $0x4] sm:$0xf]
        %v711 = vld [vmem:[%s708 + $0x8] sm:$0xf]
        %v715 = vunpack.c.l.b16 %v709
        %v716 = vunpack.c.l.b16 %v710
        %v717 = vunpack.c.l.b16 %v711
        %v718 = vpack.c.b16 %v716, %v715
        %v719 = vpack.c.b16 %v717, %v717
        %720 = vrot.lane.b32.xlu0 %v331, 126
        %v721 = vpop.permute.xlu0 %720
        %722 = vrot.lane.b32.xlu0 %v332, 126
        %v723 = vpop.permute.xlu0 %722
        %v724 = vsel %vm646, %v721, %v723
        %v726 = vsel %vm347, %v718, 0
        %v729 = vsel %vm347, %v719, 0
        %v732 = vsel %vm354, %v724, 0
        %734 = vmatprep.subr.bf16.mxu0 0
        %735 = vmatpush1.bf16.msra.mxu0 0
        %736 = vmatprep.subr.bf16.mxu0 0
        %737 = vmatpush1.bf16.msra.mxu0 0
        %738 = vmatprep.subr.bf16.mxu0 0
        %739 = vmatpush1.bf16.msra.mxu0 0
        %740 = vmatprep.subr.bf16.mxu0 0
        %741 = vmatpush1.bf16.msra.mxu0 0
        %742 = vmatprep.subr.bf16.mxu0 0
        %743 = vmatpush1.bf16.msra.mxu0 0
        %744 = vmatprep.subr.bf16.mxu0 0
        %745 = vmatpush1.bf16.msra.mxu0 0
        %746 = vmatprep.subr.bf16.mxu0 0
        %747 = vmatpush1.bf16.msra.mxu0 0
        %748 = vmatprep.subr.bf16.mxu0 0
        %749 = vmatpush1.bf16.msra.mxu0 %v732
        %750 = vmatprep.subr.bf16.mxu0 0
        %751 = vmatpush2.bf16.msra.mxu0 0
        %752 = vmatprep.subr.bf16.mxu0 0
        %753 = vmatpush2.bf16.msra.mxu0 0
        %754 = vmatprep.subr.bf16.mxu0 0
        %755 = vmatpush2.bf16.msra.mxu0 0
        %756 = vmatprep.subr.bf16.mxu0 0
        %757 = vmatpush2.bf16.msra.mxu0 0
        %758 = vmatprep.subr.bf16.mxu0 0
        %759 = vmatpush2.bf16.msra.mxu0 0
        %760 = vmatprep.subr.bf16.mxu0 0
        %761 = vmatpush2.bf16.msra.mxu0 0
        %762 = vmatprep.subr.bf16.mxu0 0
        %763 = vmatpush2.bf16.msra.mxu0 0
        %764 = vmatprep.subr.bf16.mxu0 0
        %765 = vmatpush2.bf16.msra.mxu0 0
        %766 = vmatprep.mubr.bf16.mxu0 0
        %767 = vmatmul.mubr.bf16.gmra.mxu0 %v726
        %v768 = vpop.f32.mrf.mxu0
        %v769 = vadd.f32 0.0, %v768
        %v770 = vpop.f32.mrf.mxu0
        %v771 = vpop.f32.mrf.mxu0
        %v772 = vadd.f32 0.0, %v771
        %v773 = vpop.f32.mrf.mxu0
        %774 = vmatprep.mubr.bf16.mxu0 0
        %775 = vmatmul.mubr.bf16.gmra.mxu0 %v729
        %v776 = vpop.f32.mrf.mxu0
        %v777 = vadd.f32 0.0, %v776
        %v778 = vpop.f32.mrf.mxu0
        %v779 = vpop.f32.mrf.mxu0
        %v780 = vpop.f32.mrf.mxu0
        %781 = vdwg.mxu0
        %v782 = vadd.f32 %v705, %v769
        %v783 = vadd.f32 %v706, %v772
        %v784 = vadd.f32 %v707, %v777
        %v785 = vld [vmem:[%s4] sm:$0xff]
        %v786 = vld [vmem:[%s4 + $0x8] sm:$0xff]
        %v787 = vld [vmem:[%s4 + $0x10] sm:$0xff]
        %789 = vset.pattern.permute.xlu0 0
        %790 = vperm.xlu0 %789, %v785
        %v791 = vpop.permute.xlu0 %790
        %794 = vset.pattern.permute.xlu0 0
        %795 = vperm.xlu0 %794, %v786
        %v796 = vpop.permute.xlu0 %795
        %799 = vset.pattern.permute.xlu0 0
        %800 = vperm.xlu0 %799, %v787
        %v801 = vpop.permute.xlu0 %800
        %v803 = vadd.f32 %v782, %v791
        %v804 = vadd.f32 %v783, %v796
        %v805 = vadd.f32 %v784, %v801
        %vm806 = vcmp.gt.f32.partialorder %v803, 1e-06
        %vm807 = vcmp.lt.f32.partialorder %v803, 1e-06
        %v808 = vsel %vm807, %v805, 0.0
        %v809 = vsel %vm806, %v804, %v808
        %v810 = vpack.c.bf16 %v803, %v803
        %811 = vst [vmem:[%s300] sm:$0xf] %v810
        %v812 = vpack.c.bf16 %v809, %v809
        %813 = vst [vmem:[%s307] sm:$0xf] %v812
        %s814 = sand.u32 %s167, 1
        %s815 = scalar_lea.sflag [#allocation3], %s814
        %s816 = sand.u32 %s167, 1
        %s817 = smul.addr %s816, 4
        %s818 = scalar_lea.vmem [#allocation2], %s817
        %s819 = sand.u32 %s195, 1
        %s820 = scalar_lea.sflag [#allocation5], %s819
        %s821 = sand.u32 %s195, 1
        %s822 = smul.addr %s821, 4
        %s823 = scalar_lea.vmem [#allocation4], %s822
        // Predicated region
        $region41: #{modified_conv_gamma.1} parent=39 // pred_check
          %p824 = pneg %p177
        $region42: #{modified_conv_gamma.1} parent=39 // pred_check_branch
          %826 = sbr.rel (%p824) target = $region44
        $region43: #{modified_conv_gamma.1} parent=39 // pred_region
          %s828 = ssub.s32 64, 64
          %829 = vsyncadd %s815, %s828
          %s830 = sadd.s32 %s29, %s28
          %s831 = smul.addr %s830, 64
          %s832 = scalar_lea.hbm %s5, %s831
          %s834 = sshll.u32 %s818, 4
          %s835 = int_to_ptr.vmem [resolvable:$true] %s834
          %837 = dma.vmem_to_hbm [thread:$0]  %s835, 64, %s832, %s815
        $region44: #{modified_conv_gamma.1} parent=39 // pred_fallthru
          _
        // Predicated region
        $region45: #{modified_conv_gamma.1} parent=39 // pred_check
          %p838 = pneg %p205
        $region46: #{modified_conv_gamma.1} parent=39 // pred_check_branch
          %840 = sbr.rel (%p838) target = $region48
        $region47: #{modified_conv_gamma.1} parent=39 // pred_region
          %s842 = ssub.s32 64, 64
          %843 = vsyncadd %s820, %s842
          %s844 = sadd.s32 %s29, %s28
          %s845 = smul.addr %s844, 64
          %s846 = scalar_lea.hbm %s6, %s845
          %s848 = sshll.u32 %s823, 4
          %s849 = int_to_ptr.vmem [resolvable:$true] %s848
          %851 = dma.vmem_to_hbm [thread:$0]  %s849, 64, %s846, %s820
        $region48: #{modified_conv_gamma.1} parent=39 // pred_fallthru
          _
      $region40: #{modified_conv_gamma.1} parent=5 // pred_fallthru
        _
      %p852 = scmp.le.s32.totalorder 2, %s19
      // Predicated region
      $region49: #{modified_conv_gamma.1} parent=5 // pred_check
        %p853 = pneg %p852
      $region50: #{modified_conv_gamma.1} parent=5 // pred_check_branch
        %855 = sbr.rel (%p853) target = $region52
      $region51: #{modified_conv_gamma.1} parent=5 // pred_region
        %s856 = ssub.s32 %s19, 2
        // Predicated region
        $region53: #{modified_conv_gamma.1} parent=51 // pred_check
          %p857 = pneg %p183
        $region54: #{modified_conv_gamma.1} parent=51 // pred_check_branch
          %859 = sbr.rel (%p857) target = $region56
        $region55: #{modified_conv_gamma.1} parent=51 // pred_region
          %s860 = sand.u32 %s168, 1
          %s861 = scalar_lea.sflag [#allocation3], %s860
          %s862 = sand.u32 %s168, 1
          %s863 = smul.addr %s862, 4
          %s864 = scalar_lea.vmem [#allocation2], %s863
          %865 = dma.done %s861, 64
        $region56: #{modified_conv_gamma.1} parent=51 // pred_fallthru
          _
        // Predicated region
        $region57: #{modified_conv_gamma.1} parent=51 // pred_check
          %p866 = pneg %p211
        $region58: #{modified_conv_gamma.1} parent=51 // pred_check_branch
          %868 = sbr.rel (%p866) target = $region60
        $region59: #{modified_conv_gamma.1} parent=51 // pred_region
          %s869 = sand.u32 %s196, 1
          %s870 = scalar_lea.sflag [#allocation5], %s869
          %s871 = sand.u32 %s196, 1
          %s872 = smul.addr %s871, 4
          %s873 = scalar_lea.vmem [#allocation4], %s872
          %874 = dma.done %s870, 64
        $region60: #{modified_conv_gamma.1} parent=51 // pred_fallthru
          _
      $region52: #{modified_conv_gamma.1} parent=5 // pred_fallthru
        _
    $region6: #{modified_conv_gamma.1} parent=1 // loop_footer
      %s23 = sadd.s32 1, %s19
    $region7: #{modified_conv_gamma.1} parent=1 // loop_footer_branch
      %18 = sbr.rel target = $region3
    $region8: #{modified_conv_gamma.1} parent=1 // loop_exit
      _
    %875 = vsyncpa [#allocation3], 1
    %s876 = scalar_lea.sflag [#allocation3], 1
    %877 = vsyncpa %s876, 1
    %878 = vsyncpa [#allocation5], 1
    %s879 = scalar_lea.sflag [#allocation5], 1
    %880 = vsyncpa %s879, 1

</llo_original>
